<compile_context>
chip_gen: v6e
topology: v6e:2x2x1
jax: 0.10.0
libtpu: 0.0.40
codegen_flags: <defaults>
</compile_context>

<pallas_src>
import jax
import jax.numpy as jnp
from jax.experimental import pallas as pl
from jax.experimental.pallas import tpu as pltpu


def _round_up(v, m):
    return (v + m - 1) // m * m


def _conv_stats_kernel(a_ref, w_ref, y_ref, stats_ref):
    # Hot path: (C_pad, K_pad) @ (K_pad, TM) on the MXU with f32 accumulation.
    # The pixel dimension (Ho*Wo tile) sits on lanes -> lane-dense stores and
    # lane-dense BN reductions.
    y = jnp.dot(w_ref[...], a_ref[0], preferred_element_type=jnp.float32)
    # Conv intermediate written back in bf16; statistics are reduced from the
    # f32 accumulator before the cast, so they are unaffected by the rounding.
    y_ref[0] = y.astype(y_ref.dtype)
    # Packed per-tile partial statistics: one (2, C_pad) store, channels on
    # lanes.  Zero-padded pixel columns contribute exactly 0 to both rows, so
    # dividing by the true pixel count later yields the global statistics.
    # TODO(synk): E[y^2]-E[y]^2 in f32 can cancel catastrophically for layers
    # with |mean| >> std; switch to per-tile-centered sums if that shows up.
    stats_ref[...] = jnp.stack(
        [jnp.sum(y, axis=-1), jnp.sum(y * y, axis=-1)], axis=0)[None, None]


def _bn_apply_kernel(y_ref, scale_ref, shift_ref, o_ref):
    # Single f32 FMA per element; (C_pad, 1) scale/shift broadcast along lanes
    # once per tile.  Output is written in the final (N, C, Ho*Wo) layout.
    o_ref[0] = (y_ref[0].astype(jnp.float32) * scale_ref[...]
                + shift_ref[...]).astype(o_ref.dtype)


def conv2d_bn(x, weight, gamma, beta, *, stride=1, padding=0, dilation=1,
              eps=1e-5, tile_hw=2048):
    """Conv2d(bias=False) + BatchNorm2d (training-mode batch statistics).

    x: (N, C_in, H, W) NCHW, weight: (C_out, C_in, KH, KW) (PyTorch layouts).
    tile_hw: output pixels (columns of one image's Ho*Wo) per grid step.
      Default 2048 keeps the double-buffered working set around 10-25 MiB for
      typical K (<=2304) / C_out (<=256), well inside v7x's 64 MiB/TC and tiny
      for v5e/v6e's 128 MiB; it is shrunk automatically if the estimated
      working set exceeds ~48 MiB.  On v5e large-K/C layers may be MXU-bound
      rather than HBM-bound, in which case bigger tiles stop helping -- the
      remaining lever there is the in-kernel im2col (see TODO below).
    """
    N, C, H, W = x.shape
    C_out, C_in, KH, KW = weight.shape
    assert C == C_in  # TODO(synk): groups != 1 (block-diagonal weight) not implemented
    Ho = (H + 2 * padding - dilation * (KH - 1) - 1) // stride + 1
    Wo = (W + 2 * padding - dilation * (KW - 1) - 1) // stride + 1
    HW = Ho * Wo
    M = N * HW                      # true pixel count for the statistics
    K = C_in * KH * KW

    K_pad = _round_up(K, 16)        # bf16 sublane packing of the patch matrix
    C_pad = _round_up(C_out, 8)     # sublane count of the (C, HW) output
    # (C_pad rounded to 8, not 16: avoids a trailing channel slice whenever
    #  C_out % 8 == 0; the bf16 weight block is tiny and resident anyway.)

    # --- tile / VMEM sizing ----------------------------------------------------
    tm = max(128, min(_round_up(tile_hw, 128), _round_up(HW, 128)))

    def _working_set(t):
        p1 = (2 * K_pad * t * 2          # A tile, double-buffered, bf16
              + 2 * C_pad * K_pad * 2    # resident weights (2 bufs, worst case)
              + 2 * C_pad * t * 2        # y tile, double-buffered, bf16
              + 2 * 2 * C_pad * 4)       # packed stats
        p2 = (2 * C_pad * t * 2          # y tile in, bf16
              + 2 * C_pad * t * 4        # out tile, f32
              + 4 * C_pad * 4)           # scale / shift
        return max(p1, p2)

    while _working_set(tm) > 48 * 1024 * 1024 and tm > 128:
        tm = max(128, _round_up(tm // 2, 128))
    vmem_limit = min(64 * 1024 * 1024,
                     max(32 * 1024 * 1024, int(_working_set(tm) * 1.5)))

    HW_pad = _round_up(HW, tm)
    n_hw_tiles = HW_pad // tm

    # --- patch matrix (interim materialized im2col, bf16 throughout) -----------
    # TODO(synk): replace with in-kernel accumulation over (kh, kw) reading
    # shifted windows of x (removes the KH*KW x HBM read amplification); the
    # materialized path is kept for now, but in bf16 and with no transposes.
    x_pad = jnp.pad(x.astype(jnp.bfloat16),
                    ((0, 0), (0, 0), (padding, padding), (padding, padding)))
    cols = []
    for kh in range(KH):
        for kw in range(KW):
            h0 = kh * dilation
            w0 = kw * dilation
            cols.append(
                x_pad[:, :,
                      h0:h0 + (Ho - 1) * stride + 1:stride,
                      w0:w0 + (Wo - 1) * stride + 1:stride])  # (N, C, Ho, Wo)
    # (N, C, KH*KW, Ho, Wo) -> (N, C*KH*KW, Ho*Wo); K ordering (c, kh, kw)
    # matches weight.reshape(C_out, C_in*KH*KW).  N stays leading -> pure
    # reshape, no transpose / extra HBM round trip.
    patches = jnp.stack(cols, axis=2).reshape(N, K, HW)
    a = jnp.pad(patches, ((0, 0), (0, K_pad - K), (0, HW_pad - HW)))
    w_mat = jnp.pad(weight.reshape(C_out, K).astype(jnp.bfloat16),
                    ((0, C_pad - C_out), (0, K_pad - K)))

    # --- pass 1: conv matmul + packed partial BN statistics ---------------------
    y, stats = pl.pallas_call(
        _conv_stats_kernel,
        out_shape=(
            jax.ShapeDtypeStruct((N, C_pad, HW_pad), jnp.bfloat16),
            jax.ShapeDtypeStruct((N, n_hw_tiles, 2, C_pad), jnp.float32),
        ),
        grid=(N, n_hw_tiles),
        in_specs=[
            pl.BlockSpec((1, K_pad, tm), lambda n, t: (n, 0, t)),    # A tile (bf16)
            pl.BlockSpec((C_pad, K_pad), lambda n, t: (0, 0)),       # weights (resident)
        ],
        out_specs=(
            pl.BlockSpec((1, C_pad, tm), lambda n, t: (n, 0, t)),    # conv tile (bf16)
            pl.BlockSpec((1, 1, 2, C_pad), lambda n, t: (n, t, 0, 0)),  # packed stats
        ),
        compiler_params=pltpu.CompilerParams(
            dimension_semantics=("parallel", "parallel"),
            vmem_limit_bytes=vmem_limit,
        ),
    )(a, w_mat)

    # --- finalize BN statistics (tiny per-channel vectors, plain JAX glue) ------
    gamma_p = jnp.pad(gamma.astype(jnp.float32), (0, C_pad - C_out))
    beta_p = jnp.pad(beta.astype(jnp.float32), (0, C_pad - C_out))
    totals = jnp.sum(stats, axis=(0, 1))                 # (2, C_pad)
    mean = totals[0] / M                                 # divide by the *true* M
    var = jnp.maximum(totals[1] / M - mean * mean, 0.0)  # biased variance (training BN)
    # TODO(synk): if running stats are ever exported, PyTorch's running_var uses
    # the unbiased estimator (M/(M-1) factor); normalization itself is biased.
    inv_std = jax.lax.rsqrt(var + eps)
    scale = gamma_p * inv_std                            # padded channels: gamma=0 -> 0
    shift = beta_p - mean * scale
    scale2 = scale.reshape(C_pad, 1)
    shift2 = shift.reshape(C_pad, 1)

    # --- pass 2: apply normalization, writing NCHW layout directly --------------
    out_flat = pl.pallas_call(
        _bn_apply_kernel,
        out_shape=jax.ShapeDtypeStruct((N, C_pad, HW_pad), jnp.float32),
        grid=(N, n_hw_tiles),
        in_specs=[
            pl.BlockSpec((1, C_pad, tm), lambda n, t: (n, 0, t)),
            pl.BlockSpec((C_pad, 1), lambda n, t: (0, 0)),
            pl.BlockSpec((C_pad, 1), lambda n, t: (0, 0)),
        ],
        out_specs=pl.BlockSpec((1, C_pad, tm), lambda n, t: (n, 0, t)),
        compiler_params=pltpu.CompilerParams(
            dimension_semantics=("parallel", "parallel"),
            vmem_limit_bytes=vmem_limit,
        ),
    )(y, scale2, shift2)

    # (N, C_pad, Ho*Wo_pad) is already NCHW-ordered; when C_out % 8 == 0 and
    # Ho*Wo % 128 == 0 (common case, incl. this test) this is a free reshape.
    if C_pad == C_out and HW_pad == HW:
        return out_flat.reshape(N, C_out, Ho, Wo)
    return out_flat[:, :C_out, :HW].reshape(N, C_out, Ho, Wo)


def _reference(x, weight, gamma, beta, *, stride, padding, dilation, eps,
               input_dtype=jnp.float32, quantize_y=False):
    y = jax.lax.conv_general_dilated(
        x.astype(input_dtype), weight.astype(input_dtype),
        window_strides=(stride, stride),
        padding=[(padding, padding), (padding, padding)],
        rhs_dilation=(dilation, dilation),
        dimension_numbers=("NCHW", "OIHW", "NCHW"),
        preferred_element_type=jnp.float32,
    )
    mean = jnp.mean(y, axis=(0, 2, 3), keepdims=True)
    var = jnp.mean((y - mean) ** 2, axis=(0, 2, 3), keepdims=True)
    if quantize_y:  # mirror the kernel's bf16 conv intermediate (stats from f32 y)
        y = y.astype(jnp.bfloat16).astype(jnp.float32)
    g = gamma.reshape(1, -1, 1, 1)
    b = beta.reshape(1, -1, 1, 1)
    return (y - mean) * jax.lax.rsqrt(var + eps) * g + b


if __name__ == "__main__":
    # Module config: Conv2dBN(in_channels=4, out_channels=8, kernel_size=3,
    #                         stride=1, padding=1)
    N, C_in, H, W = 2, 4, 16, 16
    C_out, KS = 8, 3
    stride, padding, dilation, eps = 1, 1, 1, 1e-5

    key = jax.random.PRNGKey(0)
    kx, kw = jax.random.split(key)
    x = jax.random.normal(kx, (N, C_in, H, W), dtype=jnp.float32)
    # Deterministic conv weight (Conv2d default kaiming-uniform bound).
    fan_in = C_in * KS * KS
    bound = (1.0 / fan_in) ** 0.5
    weight = jax.random.uniform(
        kw, (C_out, C_in, KS, KS), dtype=jnp.float32, minval=-bound, maxval=bound)
    # BatchNorm2d default init: weight=1, bias=0.
    gamma = jnp.ones((C_out,), dtype=jnp.float32)
    beta = jnp.zeros((C_out,), dtype=jnp.float32)

    # tile_hw=128 -> 2 pixel tiles per image x 2 images = 4 grid steps
    # (exercises the pipeline and the cross-tile statistics reduction).
    out = conv2d_bn(x, weight, gamma, beta,
                    stride=stride, padding=padding, dilation=dilation, eps=eps,
                    tile_hw=128)
    out = jax.block_until_ready(out)
    assert out.shape == (N, C_out, H, W)

    # Structural check: reference with the same quantization points as the
    # kernel (bf16 conv inputs, f32 accumulation, bf16 conv intermediate,
    # stats from the f32 accumulator).  Tolerance covers 1-ulp bf16 rounding
    # boundary mismatches between the MXU and XLA conv results.
    ref_bf16 = _reference(x, weight, gamma, beta, stride=stride, padding=padding,
                          dilation=dilation, eps=eps,
                          input_dtype=jnp.bfloat16, quantize_y=True)
    assert jnp.allclose(out, ref_bf16, atol=1e-2, rtol=1e-2)

    # Module-parity sanity check vs exact f32 semantics (bf16-level tolerance).
    ref_f32 = _reference(x, weight, gamma, beta, stride=stride, padding=padding,
                         dilation=dilation, eps=eps, input_dtype=jnp.float32)
    assert jnp.allclose(out, ref_f32, atol=7.5e-2, rtol=5e-2)

    print("KERNEL_OK")
</pallas_src>

<mosaic_0001>
module attributes {stable_mosaic.version = 11 : i64} {
  func.func @_conv_stats_kernel(%arg0: i32, %arg1: i32, %arg2: memref<1x48x128xbf16, #tpu.memory_space<vmem>>, %arg3: memref<8x48xbf16, #tpu.memory_space<vmem>>, %arg4: memref<1x8x128xbf16, #tpu.memory_space<vmem>>, %arg5: memref<1x1x2x8xf32, #tpu.memory_space<vmem>>) attributes {dimension_semantics = [#tpu.dimension_semantics<parallel>, #tpu.dimension_semantics<parallel>], iteration_bounds = array<i64: 2, 2>, scalar_prefetch = 0 : i64, scratch_operands = 0 : i64, tpu.core_type = #tpu.core_type<tc>, window_params = [{transform_indices = @transform_0, window_bounds = array<i64: 1, 48, 128>}, {pipeline_mode = #tpu.pipeline_mode<synchronous>, transform_indices = @transform_1, window_bounds = array<i64: 8, 48>}, {transform_indices = @transform_2, window_bounds = array<i64: 1, 8, 128>}, {transform_indices = @transform_3, window_bounds = array<i64: 1, 1, 2, 8>}]} {
    %c0 = arith.constant 0 : index
    %c0_0 = arith.constant 0 : index
    %0 = vector.load %arg3[%c0, %c0_0] : memref<8x48xbf16, #tpu.memory_space<vmem>>, vector<8x48xbf16>
    %c0_1 = arith.constant 0 : index
    %c0_2 = arith.constant 0 : index
    %c0_3 = arith.constant 0 : index
    %1 = vector.load %arg2[%c0_1, %c0_2, %c0_3] : memref<1x48x128xbf16, #tpu.memory_space<vmem>>, vector<1x48x128xbf16>
    %2 = vector.shape_cast %1 : vector<1x48x128xbf16> to vector<48x128xbf16>
    %cst = arith.constant dense<0.000000e+00> : vector<8x128xf32>
    %3 = tpu.matmul %0, %2, %cst {dimension_numbers = #tpu.dot_dimension_numbers<[1], [0], [0], [1], [0, 0, 1, 1], [], []>} : vector<8x48xbf16>, vector<48x128xbf16>, vector<8x128xf32> -> vector<8x128xf32>
    %4 = arith.truncf %3 : vector<8x128xf32> to vector<8x128xbf16>
    %c0_4 = arith.constant 0 : index
    %c0_5 = arith.constant 0 : index
    %c0_6 = arith.constant 0 : index
    %5 = vector.load %arg4[%c0_4, %c0_5, %c0_6] : memref<1x8x128xbf16, #tpu.memory_space<vmem>>, vector<1x8x128xbf16>
    %6 = vector.shape_cast %5 : vector<1x8x128xbf16> to vector<8x128xbf16>
    %7 = vector.shape_cast %4 : vector<8x128xbf16> to vector<1x8x128xbf16>
    tpu.vector_store %arg4[%c0_4, %c0_5, %c0_6], %7 {strides = array<i32>} : memref<1x8x128xbf16, #tpu.memory_space<vmem>>, vector<1x8x128xbf16>,
    %cst_7 = arith.constant dense<0.000000e+00> : vector<8xf32>
    %8 = vector.multi_reduction <add>, %3, %cst_7 [1] : vector<8x128xf32> to vector<8xf32>
    %9 = arith.mulf %3, %3 : vector<8x128xf32>
    %cst_8 = arith.constant dense<0.000000e+00> : vector<8xf32>
    %10 = vector.multi_reduction <add>, %9, %cst_8 [1] : vector<8x128xf32> to vector<8xf32>
    %11 = vector.shape_cast %8 : vector<8xf32> to vector<1x8xf32>
    %12 = vector.shape_cast %10 : vector<8xf32> to vector<1x8xf32>
    %13 = tpu.concatenate %11, %12 in 0 : vector<1x8xf32>, vector<1x8xf32> -> vector<2x8xf32>
    %14 = vector.shape_cast %13 : vector<2x8xf32> to vector<1x1x2x8xf32>
    %c0_9 = arith.constant 0 : index
    %c0_10 = arith.constant 0 : index
    %c0_11 = arith.constant 0 : index
    %c0_12 = arith.constant 0 : index
    %15 = vector.load %arg5[%c0_9, %c0_10, %c0_11, %c0_12] : memref<1x1x2x8xf32, #tpu.memory_space<vmem>>, vector<1x1x2x8xf32>
    tpu.vector_store %arg5[%c0_9, %c0_10, %c0_11, %c0_12], %14 {strides = array<i32>} : memref<1x1x2x8xf32, #tpu.memory_space<vmem>>, vector<1x1x2x8xf32>,
    return
  }
  func.func @transform_0(%arg0: i32, %arg1: i32) -> (i32, i32, i32) {
    %c0_i32 = arith.constant 0 : i32
    %c0_i32_0 = arith.constant 0 : i32
    return %arg0, %c0_i32, %arg1 : i32, i32, i32
  }
  func.func @transform_1(%arg0: i32, %arg1: i32) -> (i32, i32) {
    %c0_i32 = arith.constant 0 : i32
    %c0_i32_0 = arith.constant 0 : i32
    %c0_i32_1 = arith.constant 0 : i32
    return %c0_i32, %c0_i32_0 : i32, i32
  }
  func.func @transform_2(%arg0: i32, %arg1: i32) -> (i32, i32, i32) {
    %c0_i32 = arith.constant 0 : i32
    %c0_i32_0 = arith.constant 0 : i32
    return %arg0, %c0_i32, %arg1 : i32, i32, i32
  }
  func.func @transform_3(%arg0: i32, %arg1: i32) -> (i32, i32, i32, i32) {
    %c0_i32 = arith.constant 0 : i32
    %c0_i32_0 = arith.constant 0 : i32
    %c0_i32_1 = arith.constant 0 : i32
    return %arg0, %arg1, %c0_i32, %c0_i32_0 : i32, i32, i32, i32
  }
}

</mosaic_0001>

<llo_original>
// kernel: tpu_custom_call.1
$region0: #{tpu_custom_call.1}
  #allocation0 [shape = 'u32[]', space=smem, size = 0x4, offset = 0x4, fixed_abs, tag = 'smem constant byte address 0x4 - core index']
  #allocation1 [shape = 'u32[144,128]{1,0:T(1,128)}', space=vmem, size = 0x12000, scoped, tag = 'internal scratch']
  %s0 = inlined_call_operand.hbm [shape: bf16[2,48,256], index: 0, kind: input, shape index: {}]
  %s1 = inlined_call_operand.hbm [shape: bf16[8,48], index: 1, kind: input, shape index: {}]
  %s2 = inlined_call_operand.hbm [shape: bf16[2,8,256], index: 2, kind: output, shape index: {0}]
  %s3 = inlined_call_operand.hbm [shape: f32[2,2,2,8], index: 3, kind: output, shape index: {1}]
  %4 = xla_tuple %s2, %s3
  %s5 = sld [smem:[#allocation0]]
  $region57: #{tpu_custom_call.1} parent=0
    _
  %s7 = ssub.s32 1, %s5
  %s8 = scalar_select 0, %s7, %s5
  $region1: #{tpu_custom_call.1} parent=0
    #allocation2 [shape = 'u8[24576]{0}', space=vmem, size = 0x6000, scoped, tag = 'input window, operand 0']
    #allocation3 [shape = 's32[2]{0}', space=sflag, size = 0x8, scoped, tag = 'scoped memory for tpu_custom_call.1']
    #allocation4 [shape = 's32[2]{0}', space=sflag, size = 0x8, scoped, tag = 'scoped memory for tpu_custom_call.1']
    #allocation5 [shape = 'u8[2048]{0}', space=vmem, size = 0x800, scoped, tag = 'input window, operand 1, single buffered']
    #allocation6 [shape = 's32[1]{0}', space=sflag, size = 0x4, scoped, tag = 'scoped memory for tpu_custom_call.1']
    #allocation7 [shape = 'u8[4096]{0}', space=vmem, size = 0x1000, scoped, tag = 'output window, operand 0']
    #allocation8 [shape = 'u8[2048]{0}', space=vmem, size = 0x800, scoped, tag = 'output window, operand 1']
    #allocation9 [shape = 's32[2]{0}', space=sflag, size = 0x8, scoped, tag = 'scoped memory for tpu_custom_call.1']
    %9 = vsyncpa [#allocation3], 0
    %s10 = scalar_lea.sflag [#allocation3], 1
    %11 = vsyncpa %s10, 0
    %12 = vsyncpa [#allocation6], 0
    %13 = vsyncpa [#allocation4], 0
    %s14 = scalar_lea.sflag [#allocation4], 1
    %15 = vsyncpa %s14, 0
    %16 = vsyncpa [#allocation9], 0
    %s17 = scalar_lea.sflag [#allocation9], 1
    %18 = vsyncpa %s17, 0
    loop: start=0, step=1, limit=6
    $region2: #{tpu_custom_call.1} parent=1 // loop_pre_header
      _
    $region3: #{tpu_custom_call.1} parent=1 // loop_header
      %s20 = sphi 0, %s24
      %p21 = scmp.ge.s32.totalorder %s20, 6
      %s27 = sphi 0, %s39
      %s28 = sphi 0, %s35
      %s29 = sphi 0, %s27
      %s30 = sphi 0, %s28
      %s31 = sphi 0, %s29
      %s32 = sphi 0, %s30
      %s44 = sphi 0, %s46
      %s47 = sphi 0, %s44
      %s48 = sphi 0, %s47
      %s64 = sphi 0, %s48
      %s68 = sphi 0, %s68
      %s70 = sphi 0, %s68
      %s71 = sphi 0, %s70
      %s85 = sphi 0, %s71
      %s93 = sphi 0, %s95
      %s96 = sphi 0, %s93
      %s97 = sphi 0, %s96
      %s113 = sphi 0, %s97
      %s121 = sphi 0, %s123
      %s124 = sphi 0, %s121
      %s125 = sphi 0, %s124
      %s141 = sphi 0, %s125
    $region4: #{tpu_custom_call.1} parent=1 // loop_header_branch
      %23 = sbr.rel (%p21) target = $region8
    $region5: #{tpu_custom_call.1} parent=1 // loop_body
      %s25 = ssub.s32 %s20, 1
      %s26 = ssub.s32 %s20, 2
      %s33 = sadd.s32 1, %s28
      %p34 = scmp.ge.s32.totalorder %s33, 2
      %s35 = scalar_select %p34, 0, %s33
      %s36 = sadd.s32 1, %s27
      %s37 = scalar_select %p34, %s36, %s27
      %p38 = scmp.ge.s32.totalorder %s37, 2
      %s39 = scalar_select %p38, 0, %s37
      %s40 = ssub.s32 %s27, %s39
      %s41 = ssub.s32 %s28, %s35
      %s42 = sor.u32 %s40, %s41
      %p43 = scmp.eq.s32.totalorder %s42, 0
      %s45 = sadd.s32 %s44, 1
      %s46 = scalar_select %p43, %s44, %s45
      %p49 = pneg %p43
      %p50 = scmp.eq.s32.totalorder %s20, 3
      %p51 = por %p49, %p50
      %p52 = scmp.ne.s32.totalorder %s44, %s47
      %p53 = scmp.eq.s32.totalorder %s20, 0
      %p54 = por %p52, %p53
      %p55 = scmp.ne.s32.totalorder %s44, %s47
      %p56 = scmp.eq.s32.totalorder %s25, 3
      %p57 = por %p55, %p56
      %p58 = scmp.ne.s32.totalorder %s47, %s48
      %p59 = scmp.eq.s32.totalorder %s25, 0
      %p60 = por %p58, %p59
      %p61 = scmp.ne.s32.totalorder %s47, %s48
      %p62 = scmp.eq.s32.totalorder %s26, 3
      %p63 = por %p61, %p62
      %p65 = scmp.ne.s32.totalorder %s48, %s64
      %p66 = scmp.eq.s32.totalorder %s26, 0
      %p67 = por %p65, %p66
      %s69 = sadd.s32 %s68, 1
      %p72 = scmp.eq.s32.totalorder %s20, 3
      %p73 = scmp.ne.s32.totalorder %s68, %s70
      %p74 = scmp.eq.s32.totalorder %s20, 0
      %p75 = por %p73, %p74
      %p76 = scmp.ne.s32.totalorder %s68, %s70
      %p77 = scmp.eq.s32.totalorder %s25, 3
      %p78 = por %p76, %p77
      %p79 = scmp.ne.s32.totalorder %s70, %s71
      %p80 = scmp.eq.s32.totalorder %s25, 0
      %p81 = por %p79, %p80
      %p82 = scmp.ne.s32.totalorder %s70, %s71
      %p83 = scmp.eq.s32.totalorder %s26, 3
      %p84 = por %p82, %p83
      %p86 = scmp.ne.s32.totalorder %s71, %s85
      %p87 = scmp.eq.s32.totalorder %s26, 0
      %p88 = por %p86, %p87
      %s89 = ssub.s32 %s27, %s39
      %s90 = ssub.s32 %s28, %s35
      %s91 = sor.u32 %s89, %s90
      %p92 = scmp.eq.s32.totalorder %s91, 0
      %s94 = sadd.s32 %s93, 1
      %s95 = scalar_select %p92, %s93, %s94
      %p98 = pneg %p92
      %p99 = scmp.eq.s32.totalorder %s20, 3
      %p100 = por %p98, %p99
      %p101 = scmp.ne.s32.totalorder %s93, %s96
      %p102 = scmp.eq.s32.totalorder %s20, 0
      %p103 = por %p101, %p102
      %p104 = scmp.ne.s32.totalorder %s93, %s96
      %p105 = scmp.eq.s32.totalorder %s25, 3
      %p106 = por %p104, %p105
      %p107 = scmp.ne.s32.totalorder %s96, %s97
      %p108 = scmp.eq.s32.totalorder %s25, 0
      %p109 = por %p107, %p108
      %p110 = scmp.ne.s32.totalorder %s96, %s97
      %p111 = scmp.eq.s32.totalorder %s26, 3
      %p112 = por %p110, %p111
      %p114 = scmp.ne.s32.totalorder %s97, %s113
      %p115 = scmp.eq.s32.totalorder %s26, 0
      %p116 = por %p114, %p115
      %s117 = ssub.s32 %s27, %s39
      %s118 = ssub.s32 %s28, %s35
      %s119 = sor.u32 %s117, %s118
      %p120 = scmp.eq.s32.totalorder %s119, 0
      %s122 = sadd.s32 %s121, 1
      %s123 = scalar_select %p120, %s121, %s122
      %p126 = pneg %p120
      %p127 = scmp.eq.s32.totalorder %s20, 3
      %p128 = por %p126, %p127
      %p129 = scmp.ne.s32.totalorder %s121, %s124
      %p130 = scmp.eq.s32.totalorder %s20, 0
      %p131 = por %p129, %p130
      %p132 = scmp.ne.s32.totalorder %s121, %s124
      %p133 = scmp.eq.s32.totalorder %s25, 3
      %p134 = por %p132, %p133
      %p135 = scmp.ne.s32.totalorder %s124, %s125
      %p136 = scmp.eq.s32.totalorder %s25, 0
      %p137 = por %p135, %p136
      %p138 = scmp.ne.s32.totalorder %s124, %s125
      %p139 = scmp.eq.s32.totalorder %s26, 3
      %p140 = por %p138, %p139
      %p142 = scmp.ne.s32.totalorder %s125, %s141
      %p143 = scmp.eq.s32.totalorder %s26, 0
      %p144 = por %p142, %p143
      %p145 = scmp.le.s32.totalorder 1, %s20
      %p146 = scmp.lt.s32.totalorder %s20, 5
      %p147 = pnand %p145, %p146
      %p148 = pneg %p147
      // Predicated region
      $region9: #{tpu_custom_call.1} parent=5 // pred_check
        _
      $region10: #{tpu_custom_call.1} parent=5 // pred_check_branch
        %150 = sbr.rel (%p147) target = $region12
      $region11: #{tpu_custom_call.1} parent=5 // pred_region
        %s151 = ssub.s32 %s20, 1
        // Predicated region
        $region13: #{tpu_custom_call.1} parent=11 // pred_check
          %p152 = pneg %p81
        $region14: #{tpu_custom_call.1} parent=11 // pred_check_branch
          %154 = sbr.rel (%p152) target = $region16
        $region15: #{tpu_custom_call.1} parent=11 // pred_region
          %s156 = ssub.s32 64, 64
          %157 = vsyncadd [#allocation6], %s156
          %s159 = sshll.u32 [#allocation5], 4
          %s160 = int_to_ptr.vmem [resolvable:$true] %s159
          %162 = dma.hbm_to_vmem [thread:$0]  %s1, 64, %s160, [#allocation6]
        $region16: #{tpu_custom_call.1} parent=11 // pred_fallthru
          _
      $region12: #{tpu_custom_call.1} parent=5 // pred_fallthru
        _
      %p163 = scmp.lt.s32.totalorder %s20, 4
      // Predicated region
      $region17: #{tpu_custom_call.1} parent=5 // pred_check
        %p164 = pneg %p163
      $region18: #{tpu_custom_call.1} parent=5 // pred_check_branch
        %166 = sbr.rel (%p164) target = $region20
      $region19: #{tpu_custom_call.1} parent=5 // pred_region
        // Predicated region
        $region21: #{tpu_custom_call.1} parent=19 // pred_check
          %p167 = pneg %p54
        $region22: #{tpu_custom_call.1} parent=19 // pred_check_branch
          %169 = sbr.rel (%p167) target = $region24
        $region23: #{tpu_custom_call.1} parent=19 // pred_region
          %s170 = sand.u32 %s44, 1
          %s171 = scalar_lea.sflag [#allocation3], %s170
          %s172 = sand.u32 %s44, 1
          %s173 = smul.addr %s172, 24
          %s174 = scalar_lea.vmem [#allocation2], %s173
          %s176 = ssub.s32 384, 384
          %177 = vsyncadd %s171, %s176
          %s178 = smul.addr %s27, 12
          %s179 = sadd.s32 %s28, %s178
          %s180 = smul.addr %s179, 64
          %s181 = scalar_lea.hbm %s0, %s180
          %s182 = sshll.u32 %s174, 4
          %s183 = int_to_ptr.vmem [resolvable:$true] %s182
          %188 = dma.hbm_to_vmem [thread:$0]  %s181, 384, %s183, %s171, 128, 64, 4
        $region24: #{tpu_custom_call.1} parent=19 // pred_fallthru
          _
      $region20: #{tpu_custom_call.1} parent=5 // pred_fallthru
        _
      %p189 = scmp.le.s32.totalorder 1, %s20
      %p190 = scmp.lt.s32.totalorder %s20, 5
      %p191 = pnand %p189, %p190
      %p192 = pneg %p191
      // Predicated region
      $region25: #{tpu_custom_call.1} parent=5 // pred_check
        _
      $region26: #{tpu_custom_call.1} parent=5 // pred_check_branch
        %194 = sbr.rel (%p191) target = $region28
      $region27: #{tpu_custom_call.1} parent=5 // pred_region
        %s195 = ssub.s32 %s20, 1
        %s196 = sand.u32 %s47, 1
        %s197 = scalar_lea.sflag [#allocation3], %s196
        %s198 = sand.u32 %s47, 1
        %s199 = smul.addr %s198, 24
        %s200 = scalar_lea.vmem [#allocation2], %s199
        // Predicated region
        $region29: #{tpu_custom_call.1} parent=27 // pred_check
          %p201 = pneg %p60
        $region30: #{tpu_custom_call.1} parent=27 // pred_check_branch
          %203 = sbr.rel (%p201) target = $region32
        $region31: #{tpu_custom_call.1} parent=27 // pred_region
          %204 = dma.done %s197, 384
        $region32: #{tpu_custom_call.1} parent=27 // pred_fallthru
          _
        // Predicated region
        $region33: #{tpu_custom_call.1} parent=27 // pred_check
          %p205 = pneg %p81
        $region34: #{tpu_custom_call.1} parent=27 // pred_check_branch
          %207 = sbr.rel (%p205) target = $region36
        $region35: #{tpu_custom_call.1} parent=27 // pred_region
          %208 = dma.done [#allocation6], 64
        $region36: #{tpu_custom_call.1} parent=27 // pred_fallthru
          _
        %s209 = sand.u32 %s47, 1
        %s210 = scalar_lea.sflag [#allocation3], %s209
        %s211 = sand.u32 %s47, 1
        %s212 = smul.addr %s211, 24
        %s213 = scalar_lea.vmem [#allocation2], %s212
        %p214 = pneg %p60
        %p215 = pneg %p57
        %p216 = pneg %p81
        %p217 = pneg %p78
        %p218 = pneg %p109
        %p219 = pneg %p106
        %s220 = sand.u32 %s96, 1
        %s221 = scalar_lea.sflag [#allocation4], %s220
        %s222 = sand.u32 %s96, 1
        %s223 = smul.addr %s222, 4
        %s224 = scalar_lea.vmem [#allocation7], %s223
        %p225 = pneg %p137
        %p226 = pneg %p134
        %s227 = sand.u32 %s124, 1
        %s228 = scalar_lea.sflag [#allocation9], %s227
        %s229 = sand.u32 %s124, 1
        %s230 = smul.addr %s229, 2
        %s231 = scalar_lea.vmem [#allocation8], %s230
        %v233 = vld [vmem:[#allocation5] sm:$0xf]
        %v234 = vld [vmem:[%s200] sm:$0xf]
        %v235 = vld [vmem:[%s200 + $0x4] sm:$0xf]
        %v236 = vld [vmem:[%s200 + $0x8] sm:$0xf]
        %v237 = vld [vmem:[%s200 + $0xc] sm:$0xf]
        %v238 = vld [vmem:[%s200 + $0x10] sm:$0xf]
        %v239 = vld [vmem:[%s200 + $0x14] sm:$0xf]
        %v246 = vunpack.c.l.b16 %v234
        %v247 = vunpack.c.l.b16 %v235
        %v248 = vunpack.c.l.b16 %v236
        %v249 = vunpack.c.l.b16 %v237
        %v250 = vunpack.c.l.b16 %v238
        %v251 = vunpack.c.l.b16 %v239
        %v252 = vpack.c.b16 %v247, %v246
        %v253 = vpack.c.b16 %v249, %v248
        %v254 = vpack.c.b16 %v251, %v250
        %vm258 = vcmask 392192
        %v260 = vsel %vm258, %v233, 0
        %262 = vmatprep.subr.bf16.mxu0 0
        %263 = vmatpush1.bf16.msra.mxu0 0
        %264 = vmatprep.subr.bf16.mxu0 0
        %265 = vmatpush1.bf16.msra.mxu0 0
        %266 = vmatprep.subr.bf16.mxu0 0
        %267 = vmatpush1.bf16.msra.mxu0 0
        %268 = vmatprep.subr.bf16.mxu0 0
        %269 = vmatpush1.bf16.msra.mxu0 0
        %270 = vmatprep.subr.bf16.mxu0 0
        %271 = vmatpush1.bf16.msra.mxu0 0
        %272 = vmatprep.subr.bf16.mxu0 0
        %273 = vmatpush1.bf16.msra.mxu0 %v254
        %274 = vmatprep.subr.bf16.mxu0 0
        %275 = vmatpush1.bf16.msra.mxu0 %v253
        %276 = vmatprep.subr.bf16.mxu0 0
        %277 = vmatpush1.bf16.msra.mxu0 %v252
        %278 = vmatprep.subr.bf16.mxu0 0
        %279 = vmatpush2.bf16.msra.mxu0 0
        %280 = vmatprep.subr.bf16.mxu0 0
        %281 = vmatpush2.bf16.msra.mxu0 0
        %282 = vmatprep.subr.bf16.mxu0 0
        %283 = vmatpush2.bf16.msra.mxu0 0
        %284 = vmatprep.subr.bf16.mxu0 0
        %285 = vmatpush2.bf16.msra.mxu0 0
        %286 = vmatprep.subr.bf16.mxu0 0
        %287 = vmatpush2.bf16.msra.mxu0 0
        %288 = vmatprep.subr.bf16.mxu0 0
        %289 = vmatpush2.bf16.msra.mxu0 0
        %290 = vmatprep.subr.bf16.mxu0 0
        %291 = vmatpush2.bf16.msra.mxu0 0
        %292 = vmatprep.subr.bf16.mxu0 0
        %293 = vmatpush2.bf16.msra.mxu0 0
        %294 = vmatprep.mubr.bf16.mxu0 0
        %295 = vmatmul.mubr.bf16.gmra.mxu0 %v260
        %v296 = vpop.f32.mrf.mxu0
        %v297 = vadd.f32 0.0, %v296
        %v298 = vpop.f32.mrf.mxu0
        %v299 = vpop.f32.mrf.mxu0
        %v300 = vpop.f32.mrf.mxu0
        %301 = vdwg.mxu0
        %v302 = vpack.c.bf16 %v297, %v297
        %303 = vst [vmem:[%s224] sm:$0xf] %v302
        %304 = vadd.xlane.f32.xlu0 %v297
        %v305 = vpop.xlane.xlu0 %304
        %v306 = vmul.f32 %v297, %v297
        %307 = vadd.xlane.f32.xlu0 %v306
        %v308 = vpop.xlane.xlu0 %307
        %v310 = vlaneseq
        %v311 = vand.u32 %v310, 127
        %v312 = vlaneseq
        %v313 = vshrl.u32 %v312, 7
        %v314 = vsub.s32 %v311, %v313
        %v315 = vrot.slane %v305, %v314
        %v318 = vlaneseq
        %v319 = vshrl.u32 %v318, 7
        %v320 = vsub.s32 %v311, %v319
        %v321 = vrot.slane %v308, %v320
        %vm323 = vcmask 1040384
        %v324 = vsel %vm323, %v315, %v321
        %vm325 = vcmask 58368
        %326 = vst.msk [vmem:[%s231] sm:$0x3] %vm325, %v324
        %s327 = sand.u32 %s96, 1
        %s328 = scalar_lea.sflag [#allocation4], %s327
        %s329 = sand.u32 %s96, 1
        %s330 = smul.addr %s329, 4
        %s331 = scalar_lea.vmem [#allocation7], %s330
        %s332 = sand.u32 %s124, 1
        %s333 = scalar_lea.sflag [#allocation9], %s332
        %s334 = sand.u32 %s124, 1
        %s335 = smul.addr %s334, 2
        %s336 = scalar_lea.vmem [#allocation8], %s335
        // Predicated region
        $region37: #{tpu_custom_call.1} parent=27 // pred_check
          %p337 = pneg %p106
        $region38: #{tpu_custom_call.1} parent=27 // pred_check_branch
          %339 = sbr.rel (%p337) target = $region40
        $region39: #{tpu_custom_call.1} parent=27 // pred_region
          %s341 = ssub.s32 64, 64
          %342 = vsyncadd %s328, %s341
          %s343 = smul.addr %s29, 2
          %s344 = sadd.s32 %s30, %s343
          %s345 = smul.addr %s344, 64
          %s346 = scalar_lea.hbm %s2, %s345
          %s348 = sshll.u32 %s331, 4
          %s349 = int_to_ptr.vmem [resolvable:$true] %s348
          %351 = dma.vmem_to_hbm [thread:$0]  %s349, 64, %s346, %s328
        $region40: #{tpu_custom_call.1} parent=27 // pred_fallthru
          _
        // Predicated region
        $region41: #{tpu_custom_call.1} parent=27 // pred_check
          %p352 = pneg %p134
        $region42: #{tpu_custom_call.1} parent=27 // pred_check_branch
          %354 = sbr.rel (%p352) target = $region44
        $region43: #{tpu_custom_call.1} parent=27 // pred_region
          %s356 = ssub.s32 32, 32
          %357 = vsyncadd %s333, %s356
          %s358 = smul.addr %s29, 2
          %s359 = sadd.s32 %s30, %s358
          %s360 = smul.addr %s359, 32
          %s361 = scalar_lea.hbm %s3, %s360
          %s363 = sshll.u32 %s336, 4
          %s364 = int_to_ptr.vmem [resolvable:$true] %s363
          %366 = dma.vmem_to_hbm [thread:$0]  %s364, 32, %s361, %s333
        $region44: #{tpu_custom_call.1} parent=27 // pred_fallthru
          _
      $region28: #{tpu_custom_call.1} parent=5 // pred_fallthru
        _
      %p367 = scmp.le.s32.totalorder 2, %s20
      // Predicated region
      $region45: #{tpu_custom_call.1} parent=5 // pred_check
        %p368 = pneg %p367
      $region46: #{tpu_custom_call.1} parent=5 // pred_check_branch
        %370 = sbr.rel (%p368) target = $region48
      $region47: #{tpu_custom_call.1} parent=5 // pred_region
        %s371 = ssub.s32 %s20, 2
        // Predicated region
        $region49: #{tpu_custom_call.1} parent=47 // pred_check
          %p372 = pneg %p112
        $region50: #{tpu_custom_call.1} parent=47 // pred_check_branch
          %374 = sbr.rel (%p372) target = $region52
        $region51: #{tpu_custom_call.1} parent=47 // pred_region
          %s375 = sand.u32 %s97, 1
          %s376 = scalar_lea.sflag [#allocation4], %s375
          %s377 = sand.u32 %s97, 1
          %s378 = smul.addr %s377, 4
          %s379 = scalar_lea.vmem [#allocation7], %s378
          %380 = dma.done %s376, 64
        $region52: #{tpu_custom_call.1} parent=47 // pred_fallthru
          _
        // Predicated region
        $region53: #{tpu_custom_call.1} parent=47 // pred_check
          %p381 = pneg %p140
        $region54: #{tpu_custom_call.1} parent=47 // pred_check_branch
          %383 = sbr.rel (%p381) target = $region56
        $region55: #{tpu_custom_call.1} parent=47 // pred_region
          %s384 = sand.u32 %s125, 1
          %s385 = scalar_lea.sflag [#allocation9], %s384
          %s386 = sand.u32 %s125, 1
          %s387 = smul.addr %s386, 2
          %s388 = scalar_lea.vmem [#allocation8], %s387
          %389 = dma.done %s385, 32
        $region56: #{tpu_custom_call.1} parent=47 // pred_fallthru
          _
      $region48: #{tpu_custom_call.1} parent=5 // pred_fallthru
        _
    $region6: #{tpu_custom_call.1} parent=1 // loop_footer
      %s24 = sadd.s32 1, %s20
    $region7: #{tpu_custom_call.1} parent=1 // loop_footer_branch
      %19 = sbr.rel target = $region3
    $region8: #{tpu_custom_call.1} parent=1 // loop_exit
      _
    %390 = vsyncpa [#allocation3], 1
    %s391 = scalar_lea.sflag [#allocation3], 1
    %392 = vsyncpa %s391, 1
    %393 = vsyncpa [#allocation6], 1
    %394 = vsyncpa [#allocation4], 1
    %s395 = scalar_lea.sflag [#allocation4], 1
    %396 = vsyncpa %s395, 1
    %397 = vsyncpa [#allocation9], 1
    %s398 = scalar_lea.sflag [#allocation9], 1
    %399 = vsyncpa %s398, 1

</llo_original>
